<compile_context>
chip_gen: v7x
topology: tpu7x:2x2x1
jax: 0.10.0
libtpu: 0.0.40
codegen_flags: <defaults>
</compile_context>

<pallas_src>
import jax
import jax.numpy as jnp
from jax.experimental import pallas as pl
from jax.experimental.pallas import tpu as pltpu


_LANE = 512        # last-dim width: multiple of 128 -> lane-dense vregs
_ROW_TILE = 1024   # rows per grid step (multiple of 8/16 for f32/bf16 packing)


def _identity_kernel(x_ref, o_ref):
    # Pure streaming copy: HBM -> VMEM -> HBM, fully pipelined by BlockSpec.
    o_ref[...] = x_ref[...]


def _identity_copy(x):
    """Route one array through the Pallas identity kernel, bit-exact."""
    orig_shape = x.shape
    orig_dtype = x.dtype
    total = x.size
    if total == 0:
        return x

    # Lane-dense 2-D view: (rows, _LANE), padded so rows tiles cleanly.
    rows = pl.cdiv(total, _LANE)
    if rows <= _ROW_TILE:
        # Single block equal to the full (padded) array dims — exempt from the
        # (8, 128) divisibility rule, and small enough for VMEM anyway.
        tile_rows = rows
        padded_rows = rows
    else:
        tile_rows = _ROW_TILE
        padded_rows = pl.cdiv(rows, _ROW_TILE) * _ROW_TILE
    grid_rows = padded_rows // tile_rows

    padded_total = padded_rows * _LANE
    flat = x.reshape(-1)
    if padded_total != total:
        flat = jnp.pad(flat, (0, padded_total - total))
    x2d = flat.reshape(padded_rows, _LANE)

    out2d = pl.pallas_call(
        _identity_kernel,
        out_shape=jax.ShapeDtypeStruct((padded_rows, _LANE), orig_dtype),
        grid=(grid_rows,),
        in_specs=[pl.BlockSpec((tile_rows, _LANE), lambda i: (i, 0))],
        out_specs=pl.BlockSpec((tile_rows, _LANE), lambda i: (i, 0)),
        compiler_params=pltpu.CompilerParams(
            dimension_semantics=("parallel",),
        ),
    )(x2d)

    return out2d.reshape(-1)[:total].reshape(orig_shape)


def multi_args_identity(*args):
    """Pallas equivalent of MultiArgsIdentity.forward: returns args unchanged.

    Array arguments are passed through the identity copy kernel; any
    non-array argument is returned as-is (the module is argument-insensitive).
    """
    outs = []
    for a in args:
        if isinstance(a, (jnp.ndarray, jax.Array)):
            outs.append(_identity_copy(a))
        else:
            outs.append(a)
    return tuple(outs)


if __name__ == "__main__":
    key = jax.random.PRNGKey(0)
    k1, k2 = jax.random.split(key)

    # Small inputs consistent with typical use (NCHW feature map + a 3-D aux tensor).
    x = jax.random.normal(k1, (2, 4, 16, 16), dtype=jnp.float32)
    y = jax.random.normal(k2, (2, 8, 32), dtype=jnp.float32)

    out_x, out_y = multi_args_identity(x, y)
    out_x = jax.block_until_ready(out_x)
    out_y = jax.block_until_ready(out_y)

    # Identity must be exact (bit-for-bit copy).
    assert out_x.shape == x.shape and out_x.dtype == x.dtype
    assert out_y.shape == y.shape and out_y.dtype == y.dtype
    assert jnp.array_equal(out_x, x)
    assert jnp.array_equal(out_y, y)

    print("KERNEL_OK")
</pallas_src>

<mosaic_0001>
module attributes {stable_mosaic.version = 11 : i64} {
  func.func @_identity_kernel(%arg0: i32, %arg1: memref<4x512xf32, #tpu.memory_space<vmem>>, %arg2: memref<4x512xf32, #tpu.memory_space<vmem>>) attributes {dimension_semantics = [#tpu.dimension_semantics<parallel>], iteration_bounds = array<i64: 1>, scalar_prefetch = 0 : i64, scratch_operands = 0 : i64, tpu.core_type = #tpu.core_type<tc>, window_params = [{transform_indices = @transform_0, window_bounds = array<i64: 4, 512>}, {transform_indices = @transform_1, window_bounds = array<i64: 4, 512>}]} {
    %c0 = arith.constant 0 : index
    %c0_0 = arith.constant 0 : index
    %0 = vector.load %arg1[%c0, %c0_0] : memref<4x512xf32, #tpu.memory_space<vmem>>, vector<4x512xf32>
    %c0_1 = arith.constant 0 : index
    %c0_2 = arith.constant 0 : index
    %1 = vector.load %arg2[%c0_1, %c0_2] : memref<4x512xf32, #tpu.memory_space<vmem>>, vector<4x512xf32>
    tpu.vector_store %arg2[%c0_1, %c0_2], %0 {strides = array<i32>} : memref<4x512xf32, #tpu.memory_space<vmem>>, vector<4x512xf32>,
    return
  }
  func.func @transform_0(%arg0: i32) -> (i32, i32) {
    %c0_i32 = arith.constant 0 : i32
    %c0_i32_0 = arith.constant 0 : i32
    return %arg0, %c0_i32 : i32, i32
  }
  func.func @transform_1(%arg0: i32) -> (i32, i32) {
    %c0_i32 = arith.constant 0 : i32
    %c0_i32_0 = arith.constant 0 : i32
    return %arg0, %c0_i32 : i32, i32
  }
}

</mosaic_0001>

<llo_original>
// kernel: tpu_custom_call.1
$region0: #{tpu_custom_call.1}
  #allocation0 [shape = 'u32[]', space=smem, size = 0x4, offset = 0x4, fixed_abs, tag = 'smem constant byte address 0x4 - core index']
  #allocation1 [shape = 'u32[144,128]{1,0:T(1,128)}', space=vmem, size = 0x12000, scoped, tag = 'internal scratch']
  %s0 = inlined_call_operand.hbm [shape: f32[4,512], index: 0, kind: input, shape index: {}]
  %s1 = inlined_call_operand.hbm [shape: f32[4,512], index: 1, kind: output, shape index: {}]
  %s2 = sld [smem:[#allocation0]]
  $region18: #{tpu_custom_call.1} parent=0
    _
  %s4 = ssub.s32 1, %s2
  %s5 = scalar_select 0, %s4, %s2
  $region1: #{tpu_custom_call.1} parent=0
    #allocation2 [shape = 'u8[8192]{0}', space=vmem, size = 0x2000, scoped, tag = 'input window, operand 0, single buffered']
    #allocation3 [shape = 's32[1]{0}', space=sflag, size = 0x4, scoped, tag = 'scoped memory for tpu_custom_call.1']
    #allocation4 [shape = 's32[1]{0}', space=sflag, size = 0x4, scoped, tag = 'scoped memory for tpu_custom_call.1']
    #allocation5 [shape = 'u8[8192]{0}', space=vmem, size = 0x2000, scoped, tag = 'output window, operand 0, single buffered']
    %6 = vsyncpa [#allocation3], 0
    %7 = vsyncpa [#allocation4], 0
    // Predicated region
    $region2: #{tpu_custom_call.1} parent=1 // pred_check
      _
    $region3: #{tpu_custom_call.1} parent=1 // pred_check_branch
      %9 = sbr.rel (0) target = $region5
    $region4: #{tpu_custom_call.1} parent=1 // pred_region
      %s11 = ssub.s32 256, 256
      %12 = vsyncadd [#allocation3], %s11
      %s14 = sshll.u32 [#allocation2], 4
      %s15 = int_to_ptr.vmem [resolvable:$true] %s14
      %17 = dma.hbm_to_vmem [thread:$0]  %s0, 256, %s15, [#allocation3]
    $region5: #{tpu_custom_call.1} parent=1 // pred_fallthru
      _
    // Predicated region
    $region6: #{tpu_custom_call.1} parent=1 // pred_check
      _
    $region7: #{tpu_custom_call.1} parent=1 // pred_check_branch
      %19 = sbr.rel (0) target = $region9
    $region8: #{tpu_custom_call.1} parent=1 // pred_region
      %20 = dma.done [#allocation3], 256
    $region9: #{tpu_custom_call.1} parent=1 // pred_fallthru
      _
    %v21 = vld [vmem:[#allocation2] sm:$0xff]
    %v22 = vld [vmem:[#allocation2 + $0x8] sm:$0xff]
    %23 = vst [vmem:[#allocation5] sm:$0xff] %v21
    %24 = vst [vmem:[#allocation5 + $0x8] sm:$0xff] %v22
    // Predicated region
    $region10: #{tpu_custom_call.1} parent=1 // pred_check
      _
    $region11: #{tpu_custom_call.1} parent=1 // pred_check_branch
      %26 = sbr.rel (0) target = $region13
    $region12: #{tpu_custom_call.1} parent=1 // pred_region
      %s28 = ssub.s32 256, 256
      %29 = vsyncadd [#allocation4], %s28
      %s31 = sshll.u32 [#allocation5], 4
      %s32 = int_to_ptr.vmem [resolvable:$true] %s31
      %34 = dma.vmem_to_hbm [thread:$0]  %s32, 256, %s1, [#allocation4]
    $region13: #{tpu_custom_call.1} parent=1 // pred_fallthru
      _
    // Predicated region
    $region14: #{tpu_custom_call.1} parent=1 // pred_check
      _
    $region15: #{tpu_custom_call.1} parent=1 // pred_check_branch
      %36 = sbr.rel (0) target = $region17
    $region16: #{tpu_custom_call.1} parent=1 // pred_region
      %37 = dma.done [#allocation4], 256
    $region17: #{tpu_custom_call.1} parent=1 // pred_fallthru
      _
    %38 = vsyncpa [#allocation3], 1
    %39 = vsyncpa [#allocation4], 1

</llo_original>
